<compile_context>
chip_gen: v7x
topology: tpu7x:2x2x1
jax: 0.10.0
libtpu: 0.0.40
codegen_flags: <defaults>
</compile_context>

<pallas_src>
import functools

import jax
import jax.numpy as jnp
from jax.experimental import pallas as pl
from jax.experimental.pallas import tpu as pltpu


# ----------------------------------------------------------------------------
# Pallas kernel: fused temporal-conv (as K accumulated matmuls) + BN + ReLU
# ----------------------------------------------------------------------------
def _fuse_f2s_kernel(x_ref, w_ref, b_ref, o_ref, *, K, alpha, pad, T, T_out, HWp):
    # x_ref : (1, C_in, T*HWp)      one sample; C_in on sublanes, lanes = T*HWp
    # w_ref : (K, C_out, C_in)      BN-scale-folded conv weight (resident)
    # b_ref : (C_out, 1)            BN bias = beta - mean*scale (resident)
    # o_ref : (1, C_out, T_out*HWp) lane-dense output (HWp % 128 == 0)
    C_out = o_ref.shape[1]
    bias = b_ref[...].astype(jnp.float32)                       # (C_out, 1)
    for t in range(T_out):                                      # static, small
        base = t * alpha - pad
        acc = None
        for k in range(K):                                      # static taps
            f = base + k
            if f < 0 or f >= T:                                 # zero-pad tap: skip
                continue
            xk = x_ref[0, :, pl.ds(f * HWp, HWp)]               # (C_in, HWp), aligned
            term = jnp.dot(w_ref[k], xk,
                           preferred_element_type=jnp.float32)  # MXU
            acc = term if acc is None else acc + term
        if acc is None:                                         # unreachable for K>=1
            acc = jnp.zeros((C_out, HWp), jnp.float32)
        y = jnp.maximum(acc + bias, 0.0)                        # BN affine + ReLU (f32)
        o_ref[0, :, pl.ds(t * HWp, HWp)] = y.astype(o_ref.dtype)


def _fuse_conv_bn_relu_pallas(x_f, w, bn_scale, bn_bias, *, kernel, alpha):
    """Conv3d([K,1,1], stride=[alpha,1,1], pad=[K//2,0,0], bias=False)
    + BatchNorm3d (eval) + ReLU on the fast-path tensor x_f (N, C_in, T, H, W)."""
    N, C_in, T, H, W = x_f.shape
    C_out = w.shape[0]
    K = kernel
    pad = K // 2
    T_out = (T + 2 * pad - K) // alpha + 1
    HW = H * W
    LANE = 128
    HWp = ((HW + LANE - 1) // LANE) * LANE                     # lane-align spatial

    # ---- free/cheap layout plumbing (no unfold, no transposes) ------------
    x2 = x_f.reshape(N, C_in, T, HW)
    if HWp != HW:
        x2 = jnp.pad(x2, ((0, 0), (0, 0), (0, 0), (0, HWp - HW)))
    x2 = x2.reshape(N, C_in, T * HWp)                          # free reshape

    # conv weight (C_out, C_in, K, 1, 1) -> (K, C_out, C_in); fold BN scale in.
    w_k = jnp.transpose(w[:, :, :, 0, 0], (2, 0, 1))           # (K, C_out, C_in)
    w_k = (w_k * bn_scale[None, :, None]).astype(x_f.dtype)
    bias2 = bn_bias.reshape(C_out, 1).astype(jnp.float32)

    kern = functools.partial(_fuse_f2s_kernel, K=K, alpha=alpha, pad=pad,
                             T=T, T_out=T_out, HWp=HWp)

    out = pl.pallas_call(
        kern,
        out_shape=jax.ShapeDtypeStruct((N, C_out, T_out * HWp), x_f.dtype),
        grid_spec=pltpu.PrefetchScalarGridSpec(
            num_scalar_prefetch=0,
            grid=(N,),                                         # few, fat steps
            in_specs=[
                pl.BlockSpec((1, C_in, T * HWp), lambda n: (n, 0, 0)),
                pl.BlockSpec((K, C_out, C_in), lambda n: (0, 0, 0)),   # resident
                pl.BlockSpec((C_out, 1), lambda n: (0, 0)),            # resident
            ],
            out_specs=pl.BlockSpec((1, C_out, T_out * HWp), lambda n: (n, 0, 0)),
        ),
        compiler_params=pltpu.CompilerParams(
            dimension_semantics=("parallel",)),                # megacore on v7x
    )(x2, w_k, bias2)

    # back to NCDHW: pure reshapes (+ lane-pad strip if any) — no transpose pass
    out = out.reshape(N, C_out, T_out, HWp)
    if HWp != HW:
        out = out[..., :HW]
    return out.reshape(N, C_out, T_out, H, W)


# ----------------------------------------------------------------------------
# FuseFastToSlow module (parameters built deterministically in-script)
# ----------------------------------------------------------------------------
class FuseFastToSlow:
    def __init__(self, key, dim_in, fusion_conv_channel_ratio, fusion_kernel,
                 alpha, eps=1e-5, dtype=jnp.float32):
        self.kernel = fusion_kernel
        self.alpha = alpha
        dim_out = dim_in * fusion_conv_channel_ratio
        k_w, k_g, k_b, k_m, k_v = jax.random.split(key, 5)
        fan_in = dim_in * fusion_kernel
        self.w = (jax.random.normal(k_w, (dim_out, dim_in, fusion_kernel, 1, 1),
                                    dtype) * (2.0 / fan_in) ** 0.5)
        gamma = 1.0 + 0.1 * jax.random.normal(k_g, (dim_out,), dtype)
        beta = 0.1 * jax.random.normal(k_b, (dim_out,), dtype)
        mean = 0.1 * jax.random.normal(k_m, (dim_out,), dtype)
        var = 1.0 + 0.1 * jax.random.uniform(k_v, (dim_out,), dtype)
        self.bn_scale = gamma / jnp.sqrt(var + eps)            # BN in eval mode
        self.bn_bias = beta - mean * self.bn_scale

    def __call__(self, x):
        x_s, x_f = x[0], x[1]
        fuse = _fuse_conv_bn_relu_pallas(
            x_f, self.w, self.bn_scale, self.bn_bias,
            kernel=self.kernel, alpha=self.alpha)
        x_s_fuse = jnp.concatenate([x_s, fuse], axis=1)        # channel concat (dim=1)
        return [x_s_fuse, x_f]


# ----------------------------------------------------------------------------
# SlowFast skeleton: only the fuse stages have defined semantics in the source.
# ----------------------------------------------------------------------------
class SlowFastPallas:
    def __init__(self, key, width_per_group, beta_inv,
                 fusion_conv_channel_ratio, fusion_kernel, alpha):
        ks = jax.random.split(key, 4)
        mult = [1, 4, 8, 16]
        self.fuses = [
            FuseFastToSlow(ks[i], (width_per_group * mult[i]) // beta_inv,
                           fusion_conv_channel_ratio, fusion_kernel, alpha)
            for i in range(4)
        ]

    def forward_fuse_stage(self, stage_idx, x):
        # TODO(synk): s1..s5 (InputLayer/InternalLayer) and OutputLayer are not
        # defined in the reference source; only sX_fuse stages are implemented.
        return self.fuses[stage_idx](x)


# ----------------------------------------------------------------------------
# Pure-JAX reference for correctness check of the Pallas fuse kernel
# ----------------------------------------------------------------------------
def _fuse_ref(x_s, x_f, fuse_mod):
    K, alpha = fuse_mod.kernel, fuse_mod.alpha
    N, C_in, T, H, W = x_f.shape
    pad = K // 2
    x_p = jnp.pad(x_f, ((0, 0), (0, 0), (pad, pad), (0, 0), (0, 0)))
    T_out = (T + 2 * pad - K) // alpha + 1
    idx = jnp.arange(T_out)[:, None] * alpha + jnp.arange(K)[None, :]
    xw = x_p[:, :, idx]                                        # (N, C_in, T_out, K, H, W)
    w = fuse_mod.w[:, :, :, 0, 0]                              # (C_out, C_in, K)
    conv = jnp.einsum('ncoKhw,dcK->ndohw', xw, w)
    bn = conv * fuse_mod.bn_scale[None, :, None, None, None] \
        + fuse_mod.bn_bias[None, :, None, None, None]
    fuse = jnp.maximum(bn, 0.0)
    return jnp.concatenate([x_s, fuse], axis=1)


if __name__ == "__main__":
    key = jax.random.PRNGKey(0)
    k_model, k_s, k_f = jax.random.split(key, 3)

    # Small, SlowFast-consistent config:
    width_per_group = 16
    beta_inv = 4                       # fast path has width/beta_inv channels
    fusion_conv_channel_ratio = 2
    fusion_kernel = 5
    alpha = 4                          # fast/slow frame-rate ratio

    N, H, W = 2, 16, 16                # HW = 256 -> lane-dense output stores
    T_fast = 8
    T_slow = T_fast // alpha           # = 2
    C_slow = width_per_group           # 16
    C_fast = width_per_group // beta_inv   # 4

    x_slow = jax.random.normal(k_s, (N, C_slow, T_slow, H, W), jnp.float32)
    x_fast = jax.random.normal(k_f, (N, C_fast, T_fast, H, W), jnp.float32)

    model = SlowFastPallas(k_model, width_per_group, beta_inv,
                           fusion_conv_channel_ratio, fusion_kernel, alpha)

    # Run the s1_fuse stage (the defined hot path) through the Pallas kernel.
    out = model.forward_fuse_stage(0, [x_slow, x_fast])
    x_s_fuse, x_f_out = out
    jax.block_until_ready(x_s_fuse)
    jax.block_until_ready(x_f_out)

    # Verify against the pure-JAX reference.
    ref = _fuse_ref(x_slow, x_fast, model.fuses[0])
    assert x_s_fuse.shape == (N, C_slow + C_fast * fusion_conv_channel_ratio,
                              T_slow, H, W)
    assert x_f_out.shape == x_fast.shape
    assert jnp.allclose(x_s_fuse, ref, atol=1e-4, rtol=1e-4)

    print("KERNEL_OK")
</pallas_src>

<mosaic_0001>
module attributes {stable_mosaic.version = 11 : i64} {
  func.func @_fuse_f2s_kernel(%arg0: i32, %arg1: memref<1x4x2048xf32, #tpu.memory_space<vmem>>, %arg2: memref<5x8x4xf32, #tpu.memory_space<vmem>>, %arg3: memref<8x1xf32, #tpu.memory_space<vmem>>, %arg4: memref<1x8x512xf32, #tpu.memory_space<vmem>>) attributes {dimension_semantics = [#tpu.dimension_semantics<parallel>], iteration_bounds = array<i64: 2>, scalar_prefetch = 0 : i64, scratch_operands = 0 : i64, tpu.core_type = #tpu.core_type<tc>, window_params = [{transform_indices = @transform_0, window_bounds = array<i64: 1, 4, 2048>}, {pipeline_mode = #tpu.pipeline_mode<synchronous>, transform_indices = @transform_1, window_bounds = array<i64: 5, 8, 4>}, {pipeline_mode = #tpu.pipeline_mode<synchronous>, transform_indices = @transform_2, window_bounds = array<i64: 8, 1>}, {transform_indices = @transform_3, window_bounds = array<i64: 1, 8, 512>}]} {
    %c0 = arith.constant 0 : index
    %c0_0 = arith.constant 0 : index
    %0 = vector.load %arg3[%c0, %c0_0] : memref<8x1xf32, #tpu.memory_space<vmem>>, vector<8x1xf32>
    %c0_1 = arith.constant 0 : index
    %c0_2 = arith.constant 0 : index
    %c0_3 = arith.constant 0 : index
    %1 = vector.load %arg1[%c0_1, %c0_2, %c0_3] : memref<1x4x2048xf32, #tpu.memory_space<vmem>>, vector<1x4x256xf32>
    %2 = vector.shape_cast %1 : vector<1x4x256xf32> to vector<4x256xf32>
    %c2 = arith.constant 2 : index
    %c0_4 = arith.constant 0 : index
    %c0_5 = arith.constant 0 : index
    %3 = vector.load %arg2[%c2, %c0_4, %c0_5] : memref<5x8x4xf32, #tpu.memory_space<vmem>>, vector<1x8x4xf32>
    %4 = vector.shape_cast %3 : vector<1x8x4xf32> to vector<8x4xf32>
    %cst = arith.constant dense<0.000000e+00> : vector<8x256xf32>
    %5 = tpu.matmul %4, %2, %cst {dimension_numbers = #tpu.dot_dimension_numbers<[1], [0], [0], [1], [0, 0, 1, 1], [], []>} : vector<8x4xf32>, vector<4x256xf32>, vector<8x256xf32> -> vector<8x256xf32>
    %c0_6 = arith.constant 0 : index
    %c0_7 = arith.constant 0 : index
    %c256 = arith.constant 256 : index
    %6 = vector.load %arg1[%c0_6, %c0_7, %c256] : memref<1x4x2048xf32, #tpu.memory_space<vmem>>, vector<1x4x256xf32>
    %7 = vector.shape_cast %6 : vector<1x4x256xf32> to vector<4x256xf32>
    %c3 = arith.constant 3 : index
    %c0_8 = arith.constant 0 : index
    %c0_9 = arith.constant 0 : index
    %8 = vector.load %arg2[%c3, %c0_8, %c0_9] : memref<5x8x4xf32, #tpu.memory_space<vmem>>, vector<1x8x4xf32>
    %9 = vector.shape_cast %8 : vector<1x8x4xf32> to vector<8x4xf32>
    %cst_10 = arith.constant dense<0.000000e+00> : vector<8x256xf32>
    %10 = tpu.matmul %9, %7, %cst_10 {dimension_numbers = #tpu.dot_dimension_numbers<[1], [0], [0], [1], [0, 0, 1, 1], [], []>} : vector<8x4xf32>, vector<4x256xf32>, vector<8x256xf32> -> vector<8x256xf32>
    %11 = arith.addf %5, %10 : vector<8x256xf32>
    %c0_11 = arith.constant 0 : index
    %c0_12 = arith.constant 0 : index
    %c512 = arith.constant 512 : index
    %12 = vector.load %arg1[%c0_11, %c0_12, %c512] : memref<1x4x2048xf32, #tpu.memory_space<vmem>>, vector<1x4x256xf32>
    %13 = vector.shape_cast %12 : vector<1x4x256xf32> to vector<4x256xf32>
    %c4 = arith.constant 4 : index
    %c0_13 = arith.constant 0 : index
    %c0_14 = arith.constant 0 : index
    %14 = vector.load %arg2[%c4, %c0_13, %c0_14] : memref<5x8x4xf32, #tpu.memory_space<vmem>>, vector<1x8x4xf32>
    %15 = vector.shape_cast %14 : vector<1x8x4xf32> to vector<8x4xf32>
    %cst_15 = arith.constant dense<0.000000e+00> : vector<8x256xf32>
    %16 = tpu.matmul %15, %13, %cst_15 {dimension_numbers = #tpu.dot_dimension_numbers<[1], [0], [0], [1], [0, 0, 1, 1], [], []>} : vector<8x4xf32>, vector<4x256xf32>, vector<8x256xf32> -> vector<8x256xf32>
    %17 = arith.addf %11, %16 : vector<8x256xf32>
    %18 = vector.broadcast %0 : vector<8x1xf32> to vector<8x256xf32>
    %19 = arith.addf %17, %18 : vector<8x256xf32>
    %cst_16 = arith.constant 0.000000e+00 : f32
    %20 = vector.broadcast %cst_16 : f32 to vector<8x256xf32>
    %21 = arith.maximumf %19, %20 : vector<8x256xf32>
    %c0_17 = arith.constant 0 : index
    %c0_18 = arith.constant 0 : index
    %c0_19 = arith.constant 0 : index
    %22 = vector.load %arg4[%c0_17, %c0_18, %c0_19] : memref<1x8x512xf32, #tpu.memory_space<vmem>>, vector<1x8x256xf32>
    %23 = vector.shape_cast %22 : vector<1x8x256xf32> to vector<8x256xf32>
    %24 = vector.shape_cast %21 : vector<8x256xf32> to vector<1x8x256xf32>
    tpu.vector_store %arg4[%c0_17, %c0_18, %c0_19], %24 {strides = array<i32>} : memref<1x8x512xf32, #tpu.memory_space<vmem>>, vector<1x8x256xf32>,
    %c0_20 = arith.constant 0 : index
    %c0_21 = arith.constant 0 : index
    %c512_22 = arith.constant 512 : index
    %25 = vector.load %arg1[%c0_20, %c0_21, %c512_22] : memref<1x4x2048xf32, #tpu.memory_space<vmem>>, vector<1x4x256xf32>
    %26 = vector.shape_cast %25 : vector<1x4x256xf32> to vector<4x256xf32>
    %c0_23 = arith.constant 0 : index
    %c0_24 = arith.constant 0 : index
    %c0_25 = arith.constant 0 : index
    %27 = vector.load %arg2[%c0_23, %c0_24, %c0_25] : memref<5x8x4xf32, #tpu.memory_space<vmem>>, vector<1x8x4xf32>
    %28 = vector.shape_cast %27 : vector<1x8x4xf32> to vector<8x4xf32>
    %cst_26 = arith.constant dense<0.000000e+00> : vector<8x256xf32>
    %29 = tpu.matmul %28, %26, %cst_26 {dimension_numbers = #tpu.dot_dimension_numbers<[1], [0], [0], [1], [0, 0, 1, 1], [], []>} : vector<8x4xf32>, vector<4x256xf32>, vector<8x256xf32> -> vector<8x256xf32>
    %c0_27 = arith.constant 0 : index
    %c0_28 = arith.constant 0 : index
    %c768 = arith.constant 768 : index
    %30 = vector.load %arg1[%c0_27, %c0_28, %c768] : memref<1x4x2048xf32, #tpu.memory_space<vmem>>, vector<1x4x256xf32>
    %31 = vector.shape_cast %30 : vector<1x4x256xf32> to vector<4x256xf32>
    %c1 = arith.constant 1 : index
    %c0_29 = arith.constant 0 : index
    %c0_30 = arith.constant 0 : index
    %32 = vector.load %arg2[%c1, %c0_29, %c0_30] : memref<5x8x4xf32, #tpu.memory_space<vmem>>, vector<1x8x4xf32>
    %33 = vector.shape_cast %32 : vector<1x8x4xf32> to vector<8x4xf32>
    %cst_31 = arith.constant dense<0.000000e+00> : vector<8x256xf32>
    %34 = tpu.matmul %33, %31, %cst_31 {dimension_numbers = #tpu.dot_dimension_numbers<[1], [0], [0], [1], [0, 0, 1, 1], [], []>} : vector<8x4xf32>, vector<4x256xf32>, vector<8x256xf32> -> vector<8x256xf32>
    %35 = arith.addf %29, %34 : vector<8x256xf32>
    %c0_32 = arith.constant 0 : index
    %c0_33 = arith.constant 0 : index
    %c1024 = arith.constant 1024 : index
    %36 = vector.load %arg1[%c0_32, %c0_33, %c1024] : memref<1x4x2048xf32, #tpu.memory_space<vmem>>, vector<1x4x256xf32>
    %37 = vector.shape_cast %36 : vector<1x4x256xf32> to vector<4x256xf32>
    %c2_34 = arith.constant 2 : index
    %c0_35 = arith.constant 0 : index
    %c0_36 = arith.constant 0 : index
    %38 = vector.load %arg2[%c2_34, %c0_35, %c0_36] : memref<5x8x4xf32, #tpu.memory_space<vmem>>, vector<1x8x4xf32>
    %39 = vector.shape_cast %38 : vector<1x8x4xf32> to vector<8x4xf32>
    %cst_37 = arith.constant dense<0.000000e+00> : vector<8x256xf32>
    %40 = tpu.matmul %39, %37, %cst_37 {dimension_numbers = #tpu.dot_dimension_numbers<[1], [0], [0], [1], [0, 0, 1, 1], [], []>} : vector<8x4xf32>, vector<4x256xf32>, vector<8x256xf32> -> vector<8x256xf32>
    %41 = arith.addf %35, %40 : vector<8x256xf32>
    %c0_38 = arith.constant 0 : index
    %c0_39 = arith.constant 0 : index
    %c1280 = arith.constant 1280 : index
    %42 = vector.load %arg1[%c0_38, %c0_39, %c1280] : memref<1x4x2048xf32, #tpu.memory_space<vmem>>, vector<1x4x256xf32>
    %43 = vector.shape_cast %42 : vector<1x4x256xf32> to vector<4x256xf32>
    %c3_40 = arith.constant 3 : index
    %c0_41 = arith.constant 0 : index
    %c0_42 = arith.constant 0 : index
    %44 = vector.load %arg2[%c3_40, %c0_41, %c0_42] : memref<5x8x4xf32, #tpu.memory_space<vmem>>, vector<1x8x4xf32>
    %45 = vector.shape_cast %44 : vector<1x8x4xf32> to vector<8x4xf32>
    %cst_43 = arith.constant dense<0.000000e+00> : vector<8x256xf32>
    %46 = tpu.matmul %45, %43, %cst_43 {dimension_numbers = #tpu.dot_dimension_numbers<[1], [0], [0], [1], [0, 0, 1, 1], [], []>} : vector<8x4xf32>, vector<4x256xf32>, vector<8x256xf32> -> vector<8x256xf32>
    %47 = arith.addf %41, %46 : vector<8x256xf32>
    %c0_44 = arith.constant 0 : index
    %c0_45 = arith.constant 0 : index
    %c1536 = arith.constant 1536 : index
    %48 = vector.load %arg1[%c0_44, %c0_45, %c1536] : memref<1x4x2048xf32, #tpu.memory_space<vmem>>, vector<1x4x256xf32>
    %49 = vector.shape_cast %48 : vector<1x4x256xf32> to vector<4x256xf32>
    %c4_46 = arith.constant 4 : index
    %c0_47 = arith.constant 0 : index
    %c0_48 = arith.constant 0 : index
    %50 = vector.load %arg2[%c4_46, %c0_47, %c0_48] : memref<5x8x4xf32, #tpu.memory_space<vmem>>, vector<1x8x4xf32>
    %51 = vector.shape_cast %50 : vector<1x8x4xf32> to vector<8x4xf32>
    %cst_49 = arith.constant dense<0.000000e+00> : vector<8x256xf32>
    %52 = tpu.matmul %51, %49, %cst_49 {dimension_numbers = #tpu.dot_dimension_numbers<[1], [0], [0], [1], [0, 0, 1, 1], [], []>} : vector<8x4xf32>, vector<4x256xf32>, vector<8x256xf32> -> vector<8x256xf32>
    %53 = arith.addf %47, %52 : vector<8x256xf32>
    %54 = vector.broadcast %0 : vector<8x1xf32> to vector<8x256xf32>
    %55 = arith.addf %53, %54 : vector<8x256xf32>
    %cst_50 = arith.constant 0.000000e+00 : f32
    %56 = vector.broadcast %cst_50 : f32 to vector<8x256xf32>
    %57 = arith.maximumf %55, %56 : vector<8x256xf32>
    %c0_51 = arith.constant 0 : index
    %c0_52 = arith.constant 0 : index
    %c256_53 = arith.constant 256 : index
    %58 = vector.load %arg4[%c0_51, %c0_52, %c256_53] : memref<1x8x512xf32, #tpu.memory_space<vmem>>, vector<1x8x256xf32>
    %59 = vector.shape_cast %58 : vector<1x8x256xf32> to vector<8x256xf32>
    %60 = vector.shape_cast %57 : vector<8x256xf32> to vector<1x8x256xf32>
    tpu.vector_store %arg4[%c0_51, %c0_52, %c256_53], %60 {strides = array<i32>} : memref<1x8x512xf32, #tpu.memory_space<vmem>>, vector<1x8x256xf32>,
    return
  }
  func.func @transform_0(%arg0: i32) -> (i32, i32, i32) {
    %c0_i32 = arith.constant 0 : i32
    %c0_i32_0 = arith.constant 0 : i32
    %c0_i32_1 = arith.constant 0 : i32
    return %arg0, %c0_i32, %c0_i32_0 : i32, i32, i32
  }
  func.func @transform_1(%arg0: i32) -> (i32, i32, i32) {
    %c0_i32 = arith.constant 0 : i32
    %c0_i32_0 = arith.constant 0 : i32
    %c0_i32_1 = arith.constant 0 : i32
    %c0_i32_2 = arith.constant 0 : i32
    return %c0_i32, %c0_i32_0, %c0_i32_1 : i32, i32, i32
  }
  func.func @transform_2(%arg0: i32) -> (i32, i32) {
    %c0_i32 = arith.constant 0 : i32
    %c0_i32_0 = arith.constant 0 : i32
    %c0_i32_1 = arith.constant 0 : i32
    return %c0_i32, %c0_i32_0 : i32, i32
  }
  func.func @transform_3(%arg0: i32) -> (i32, i32, i32) {
    %c0_i32 = arith.constant 0 : i32
    %c0_i32_0 = arith.constant 0 : i32
    %c0_i32_1 = arith.constant 0 : i32
    return %arg0, %c0_i32, %c0_i32_0 : i32, i32, i32
  }
}

</mosaic_0001>

<llo_original>
// kernel: tpu_custom_call.1
$region0: #{tpu_custom_call.1}
  #allocation0 [shape = 'u32[]', space=smem, size = 0x4, offset = 0x4, fixed_abs, tag = 'smem constant byte address 0x4 - core index']
  #allocation1 [shape = 'u32[144,128]{1,0:T(1,128)}', space=vmem, size = 0x12000, scoped, tag = 'internal scratch']
  %s0 = inlined_call_operand.hbm [shape: f32[2,4,2048], index: 0, kind: input, shape index: {}]
  %s1 = inlined_call_operand.vmem [shape: f32[5,8,4], index: 1, kind: input, shape index: {}]
  %s2 = inlined_call_operand.vmem [shape: f32[8,1], index: 2, kind: input, shape index: {}]
  %s3 = inlined_call_operand.hbm [shape: f32[2,8,512], index: 3, kind: output, shape index: {}]
  %s4 = sld [smem:[#allocation0]]
  $region49: #{tpu_custom_call.1} parent=0
    _
  %s6 = ssub.s32 1, %s4
  %s7 = scalar_select 0, %s6, %s4
  $region1: #{tpu_custom_call.1} parent=0
    #allocation2 [shape = 'u8[65536]{0}', space=vmem, size = 0x10000, scoped, tag = 'input window, operand 0']
    #allocation3 [shape = 's32[2]{0}', space=sflag, size = 0x8, scoped, tag = 'scoped memory for tpu_custom_call.1']
    #allocation4 [shape = 's32[2]{0}', space=sflag, size = 0x8, scoped, tag = 'scoped memory for tpu_custom_call.1']
    #allocation5 [shape = 'u8[32768]{0}', space=vmem, size = 0x8000, scoped, tag = 'output window, operand 0']
    %8 = vsyncpa [#allocation3], 0
    %s9 = scalar_lea.sflag [#allocation3], 1
    %10 = vsyncpa %s9, 0
    %11 = vsyncpa [#allocation4], 0
    %s12 = scalar_lea.sflag [#allocation4], 1
    %13 = vsyncpa %s12, 0
    loop: start=0, step=1, limit=4
    $region2: #{tpu_custom_call.1} parent=1 // loop_pre_header
      _
    $region3: #{tpu_custom_call.1} parent=1 // loop_header
      %s15 = sphi 0, %s19
      %p16 = scmp.ge.s32.totalorder %s15, 4
      %s25 = sphi 0, %s27
      %s28 = sphi 0, %s25
      %s29 = sphi 0, %s28
      %s45 = sphi 0, %s29
      %s49 = sphi 0, %s49
      %s51 = sphi 0, %s49
      %s52 = sphi 0, %s51
      %s66 = sphi 0, %s52
      %s70 = sphi 0, %s70
      %s72 = sphi 0, %s70
      %s73 = sphi 0, %s72
      %s87 = sphi 0, %s73
      %s93 = sphi 0, %s95
      %s96 = sphi 0, %s93
      %s97 = sphi 0, %s96
      %s113 = sphi 0, %s97
    $region4: #{tpu_custom_call.1} parent=1 // loop_header_branch
      %18 = sbr.rel (%p16) target = $region8
    $region5: #{tpu_custom_call.1} parent=1 // loop_body
      %s20 = ssub.s32 %s15, 1
      %s21 = ssub.s32 %s15, 2
      %s22 = sadd.s32 %s15, 1
      %s23 = ssub.s32 %s15, %s22
      %p24 = scmp.eq.s32.totalorder %s23, 0
      %s26 = sadd.s32 %s25, 1
      %s27 = scalar_select %p24, %s25, %s26
      %p30 = pneg %p24
      %p31 = scmp.eq.s32.totalorder %s15, 1
      %p32 = por %p30, %p31
      %p33 = scmp.ne.s32.totalorder %s25, %s28
      %p34 = scmp.eq.s32.totalorder %s15, 0
      %p35 = por %p33, %p34
      %p36 = scmp.ne.s32.totalorder %s25, %s28
      %p37 = scmp.eq.s32.totalorder %s20, 1
      %p38 = por %p36, %p37
      %p39 = scmp.ne.s32.totalorder %s28, %s29
      %p40 = scmp.eq.s32.totalorder %s20, 0
      %p41 = por %p39, %p40
      %p42 = scmp.ne.s32.totalorder %s28, %s29
      %p43 = scmp.eq.s32.totalorder %s21, 1
      %p44 = por %p42, %p43
      %p46 = scmp.ne.s32.totalorder %s29, %s45
      %p47 = scmp.eq.s32.totalorder %s21, 0
      %p48 = por %p46, %p47
      %s50 = sadd.s32 %s49, 1
      %p53 = scmp.eq.s32.totalorder %s15, 1
      %p54 = scmp.ne.s32.totalorder %s49, %s51
      %p55 = scmp.eq.s32.totalorder %s15, 0
      %p56 = por %p54, %p55
      %p57 = scmp.ne.s32.totalorder %s49, %s51
      %p58 = scmp.eq.s32.totalorder %s20, 1
      %p59 = por %p57, %p58
      %p60 = scmp.ne.s32.totalorder %s51, %s52
      %p61 = scmp.eq.s32.totalorder %s20, 0
      %p62 = por %p60, %p61
      %p63 = scmp.ne.s32.totalorder %s51, %s52
      %p64 = scmp.eq.s32.totalorder %s21, 1
      %p65 = por %p63, %p64
      %p67 = scmp.ne.s32.totalorder %s52, %s66
      %p68 = scmp.eq.s32.totalorder %s21, 0
      %p69 = por %p67, %p68
      %s71 = sadd.s32 %s70, 1
      %p74 = scmp.eq.s32.totalorder %s15, 1
      %p75 = scmp.ne.s32.totalorder %s70, %s72
      %p76 = scmp.eq.s32.totalorder %s15, 0
      %p77 = por %p75, %p76
      %p78 = scmp.ne.s32.totalorder %s70, %s72
      %p79 = scmp.eq.s32.totalorder %s20, 1
      %p80 = por %p78, %p79
      %p81 = scmp.ne.s32.totalorder %s72, %s73
      %p82 = scmp.eq.s32.totalorder %s20, 0
      %p83 = por %p81, %p82
      %p84 = scmp.ne.s32.totalorder %s72, %s73
      %p85 = scmp.eq.s32.totalorder %s21, 1
      %p86 = por %p84, %p85
      %p88 = scmp.ne.s32.totalorder %s73, %s87
      %p89 = scmp.eq.s32.totalorder %s21, 0
      %p90 = por %p88, %p89
      %s91 = ssub.s32 %s15, %s22
      %p92 = scmp.eq.s32.totalorder %s91, 0
      %s94 = sadd.s32 %s93, 1
      %s95 = scalar_select %p92, %s93, %s94
      %p98 = pneg %p92
      %p99 = scmp.eq.s32.totalorder %s15, 1
      %p100 = por %p98, %p99
      %p101 = scmp.ne.s32.totalorder %s93, %s96
      %p102 = scmp.eq.s32.totalorder %s15, 0
      %p103 = por %p101, %p102
      %p104 = scmp.ne.s32.totalorder %s93, %s96
      %p105 = scmp.eq.s32.totalorder %s20, 1
      %p106 = por %p104, %p105
      %p107 = scmp.ne.s32.totalorder %s96, %s97
      %p108 = scmp.eq.s32.totalorder %s20, 0
      %p109 = por %p107, %p108
      %p110 = scmp.ne.s32.totalorder %s96, %s97
      %p111 = scmp.eq.s32.totalorder %s21, 1
      %p112 = por %p110, %p111
      %p114 = scmp.ne.s32.totalorder %s97, %s113
      %p115 = scmp.eq.s32.totalorder %s21, 0
      %p116 = por %p114, %p115
      %p117 = scmp.le.s32.totalorder 1, %s15
      %p118 = scmp.lt.s32.totalorder %s15, 3
      %p119 = pnand %p117, %p118
      %p120 = pneg %p119
      // Predicated region
      $region9: #{tpu_custom_call.1} parent=5 // pred_check
        _
      $region10: #{tpu_custom_call.1} parent=5 // pred_check_branch
        %122 = sbr.rel (%p119) target = $region12
      $region11: #{tpu_custom_call.1} parent=5 // pred_region
        %s123 = ssub.s32 %s15, 1
        // Predicated region
        $region13: #{tpu_custom_call.1} parent=11 // pred_check
          %p124 = pneg %p62
        $region14: #{tpu_custom_call.1} parent=11 // pred_check_branch
          %126 = sbr.rel (%p124) target = $region16
        $region15: #{tpu_custom_call.1} parent=11 // pred_region
          _
        $region16: #{tpu_custom_call.1} parent=11 // pred_fallthru
          _
        // Predicated region
        $region17: #{tpu_custom_call.1} parent=11 // pred_check
          %p127 = pneg %p83
        $region18: #{tpu_custom_call.1} parent=11 // pred_check_branch
          %129 = sbr.rel (%p127) target = $region20
        $region19: #{tpu_custom_call.1} parent=11 // pred_region
          _
        $region20: #{tpu_custom_call.1} parent=11 // pred_fallthru
          _
      $region12: #{tpu_custom_call.1} parent=5 // pred_fallthru
        _
      %p130 = scmp.lt.s32.totalorder %s15, 2
      // Predicated region
      $region21: #{tpu_custom_call.1} parent=5 // pred_check
        %p131 = pneg %p130
      $region22: #{tpu_custom_call.1} parent=5 // pred_check_branch
        %133 = sbr.rel (%p131) target = $region24
      $region23: #{tpu_custom_call.1} parent=5 // pred_region
        // Predicated region
        $region25: #{tpu_custom_call.1} parent=23 // pred_check
          %p134 = pneg %p35
        $region26: #{tpu_custom_call.1} parent=23 // pred_check_branch
          %136 = sbr.rel (%p134) target = $region28
        $region27: #{tpu_custom_call.1} parent=23 // pred_region
          %s137 = sand.u32 %s25, 1
          %s138 = scalar_lea.sflag [#allocation3], %s137
          %s139 = sand.u32 %s25, 1
          %s140 = smul.addr %s139, 64
          %s141 = scalar_lea.vmem [#allocation2], %s140
          %s143 = ssub.s32 1024, 1024
          %144 = vsyncadd %s138, %s143
          %s145 = smul.addr %s15, 16
          %s146 = smul.addr %s145, 64
          %s147 = scalar_lea.hbm %s0, %s146
          %s149 = sshll.u32 %s141, 4
          %s150 = int_to_ptr.vmem [resolvable:$true] %s149
          %152 = dma.hbm_to_vmem [thread:$0]  %s147, 1024, %s150, %s138
        $region28: #{tpu_custom_call.1} parent=23 // pred_fallthru
          _
      $region24: #{tpu_custom_call.1} parent=5 // pred_fallthru
        _
      %p153 = scmp.le.s32.totalorder 1, %s15
      %p154 = scmp.lt.s32.totalorder %s15, 3
      %p155 = pnand %p153, %p154
      %p156 = pneg %p155
      // Predicated region
      $region29: #{tpu_custom_call.1} parent=5 // pred_check
        _
      $region30: #{tpu_custom_call.1} parent=5 // pred_check_branch
        %158 = sbr.rel (%p155) target = $region32
      $region31: #{tpu_custom_call.1} parent=5 // pred_region
        %s159 = ssub.s32 %s15, 1
        %s160 = sand.u32 %s28, 1
        %s161 = scalar_lea.sflag [#allocation3], %s160
        %s162 = sand.u32 %s28, 1
        %s163 = smul.addr %s162, 64
        %s164 = scalar_lea.vmem [#allocation2], %s163
        // Predicated region
        $region33: #{tpu_custom_call.1} parent=31 // pred_check
          %p165 = pneg %p41
        $region34: #{tpu_custom_call.1} parent=31 // pred_check_branch
          %167 = sbr.rel (%p165) target = $region36
        $region35: #{tpu_custom_call.1} parent=31 // pred_region
          %168 = dma.done %s161, 1024
        $region36: #{tpu_custom_call.1} parent=31 // pred_fallthru
          _
        %s169 = sand.u32 %s28, 1
        %s170 = scalar_lea.sflag [#allocation3], %s169
        %s171 = sand.u32 %s28, 1
        %s172 = smul.addr %s171, 64
        %s173 = scalar_lea.vmem [#allocation2], %s172
        %p174 = pneg %p41
        %p175 = pneg %p38
        %p176 = pneg %p62
        %p177 = pneg %p59
        %p178 = pneg %p83
        %p179 = pneg %p80
        %p180 = pneg %p109
        %p181 = pneg %p106
        %s182 = sand.u32 %s96, 1
        %s183 = scalar_lea.sflag [#allocation4], %s182
        %s184 = sand.u32 %s96, 1
        %s185 = smul.addr %s184, 32
        %s186 = scalar_lea.vmem [#allocation5], %s185
        %v187 = vld [vmem:[%s2] sm:$0xff]
        %v188 = vld [vmem:[%s164] sm:$0xff]
        %s189 = scalar_lea.vmem %s1, 16
        %v190 = vld [vmem:[%s189] sm:$0xff]
        %v191 = vld [vmem:[%s164 + $0x8] sm:$0xff]
        %s192 = scalar_lea.vmem %s1, 24
        %v193 = vld [vmem:[%s192] sm:$0xff]
        %v195 = vcombine.high %v191, %v191
        %vm196 = vcmask 31744
        %v198 = vsel %vm196, %v193, 0
        %vm200 = vcmask 1043456
        %v201 = vsel %vm200, %v191, 0
        %v203 = vsel %vm200, %v195, 0
        %205 = vmatprep.subr.mxu0 %v203
        %206 = vmatpush1.msra.mxu0 %v201
        %207 = vmatprep.subr.mxu0 0.0
        %208 = vmatpush1.msra.mxu0 0.0
        %209 = vmatprep.subr.mxu0 0.0
        %210 = vmatpush1.msra.mxu0 0.0
        %211 = vmatprep.subr.mxu0 0.0
        %212 = vmatpush1.msra.mxu0 0.0
        %213 = vmatprep.subr.mxu0 0.0
        %214 = vmatpush1.msra.mxu0 0.0
        %215 = vmatprep.subr.mxu0 0.0
        %216 = vmatpush1.msra.mxu0 0.0
        %217 = vmatprep.subr.mxu0 0.0
        %218 = vmatpush1.msra.mxu0 0.0
        %219 = vmatprep.subr.mxu0 0.0
        %220 = vmatpush1.msra.mxu0 0.0
        %221 = vmatprep.subr.mxu0 0.0
        %222 = vmatpush1.msra.mxu0 0.0
        %223 = vmatprep.subr.mxu0 0.0
        %224 = vmatpush1.msra.mxu0 0.0
        %225 = vmatprep.subr.mxu0 0.0
        %226 = vmatpush1.msra.mxu0 0.0
        %227 = vmatprep.subr.mxu0 0.0
        %228 = vmatpush1.msra.mxu0 0.0
        %229 = vmatprep.subr.mxu0 0.0
        %230 = vmatpush1.msra.mxu0 0.0
        %231 = vmatprep.subr.mxu0 0.0
        %232 = vmatpush1.msra.mxu0 0.0
        %233 = vmatprep.subr.mxu0 0.0
        %234 = vmatpush1.msra.mxu0 0.0
        %235 = vmatprep.subr.mxu0 0.0
        %236 = vmatpush1.msra.mxu0 0.0
        %237 = vmatprep.subr.mxu0 0.0
        %238 = vmatpush1.msra.mxu0 0.0
        %239 = vmatprep.subr.mxu0 0.0
        %240 = vmatpush1.msra.mxu0 0.0
        %241 = vmatprep.subr.mxu0 0.0
        %242 = vmatpush1.msra.mxu0 0.0
        %243 = vmatprep.subr.mxu0 0.0
        %244 = vmatpush1.msra.mxu0 0.0
        %245 = vmatprep.subr.mxu0 0.0
        %246 = vmatpush1.msra.mxu0 0.0
        %247 = vmatprep.subr.mxu0 0.0
        %248 = vmatpush1.msra.mxu0 0.0
        %249 = vmatprep.subr.mxu0 0.0
        %250 = vmatpush1.msra.mxu0 0.0
        %251 = vmatprep.subr.mxu0 0.0
        %252 = vmatpush1.msra.mxu0 0.0
        %253 = vmatprep.subr.mxu0 0.0
        %254 = vmatpush1.msra.mxu0 0.0
        %255 = vmatprep.subr.mxu0 0.0
        %256 = vmatpush1.msra.mxu0 0.0
        %257 = vmatprep.subr.mxu0 0.0
        %258 = vmatpush1.msra.mxu0 0.0
        %259 = vmatprep.subr.mxu0 0.0
        %260 = vmatpush1.msra.mxu0 0.0
        %261 = vmatprep.subr.mxu0 0.0
        %262 = vmatpush1.msra.mxu0 0.0
        %263 = vmatprep.subr.mxu0 0.0
        %264 = vmatpush1.msra.mxu0 0.0
        %265 = vmatprep.subr.mxu0 0.0
        %266 = vmatpush1.msra.mxu0 0.0
        %267 = vmatprep.subr.mxu0 0.0
        %268 = vmatpush1.msra.mxu0 0.0
        %269 = vmatprep.mubr.f32.mxu0 0.0
        %270 = vmatmul.mubr.f32.gmra.mrb[0].mxu0 %v198
        %v271 = vpop.f32.mrb[0].mxu0
        %v272 = vadd.f32 0.0, %v271
        %v273 = vpop.f32.mrb[0].mxu0
        %v274 = vadd.f32 0.0, %v273
        %275 = vdwg.mxu0
        %v277 = vcombine.high %v188, %v188
        %v279 = vsel %vm196, %v190, 0
        %v281 = vsel %vm200, %v188, 0
        %v283 = vsel %vm200, %v277, 0
        %285 = vmatprep.subr.mxu0 %v283
        %286 = vmatpush1.msra.mxu0 %v281
        %287 = vmatprep.subr.mxu0 0.0
        %288 = vmatpush1.msra.mxu0 0.0
        %289 = vmatprep.subr.mxu0 0.0
        %290 = vmatpush1.msra.mxu0 0.0
        %291 = vmatprep.subr.mxu0 0.0
        %292 = vmatpush1.msra.mxu0 0.0
        %293 = vmatprep.subr.mxu0 0.0
        %294 = vmatpush1.msra.mxu0 0.0
        %295 = vmatprep.subr.mxu0 0.0
        %296 = vmatpush1.msra.mxu0 0.0
        %297 = vmatprep.subr.mxu0 0.0
        %298 = vmatpush1.msra.mxu0 0.0
        %299 = vmatprep.subr.mxu0 0.0
        %300 = vmatpush1.msra.mxu0 0.0
        %301 = vmatprep.subr.mxu0 0.0
        %302 = vmatpush1.msra.mxu0 0.0
        %303 = vmatprep.subr.mxu0 0.0
        %304 = vmatpush1.msra.mxu0 0.0
        %305 = vmatprep.subr.mxu0 0.0
        %306 = vmatpush1.msra.mxu0 0.0
        %307 = vmatprep.subr.mxu0 0.0
        %308 = vmatpush1.msra.mxu0 0.0
        %309 = vmatprep.subr.mxu0 0.0
        %310 = vmatpush1.msra.mxu0 0.0
        %311 = vmatprep.subr.mxu0 0.0
        %312 = vmatpush1.msra.mxu0 0.0
        %313 = vmatprep.subr.mxu0 0.0
        %314 = vmatpush1.msra.mxu0 0.0
        %315 = vmatprep.subr.mxu0 0.0
        %316 = vmatpush1.msra.mxu0 0.0
        %317 = vmatprep.subr.mxu0 0.0
        %318 = vmatpush1.msra.mxu0 0.0
        %319 = vmatprep.subr.mxu0 0.0
        %320 = vmatpush1.msra.mxu0 0.0
        %321 = vmatprep.subr.mxu0 0.0
        %322 = vmatpush1.msra.mxu0 0.0
        %323 = vmatprep.subr.mxu0 0.0
        %324 = vmatpush1.msra.mxu0 0.0
        %325 = vmatprep.subr.mxu0 0.0
        %326 = vmatpush1.msra.mxu0 0.0
        %327 = vmatprep.subr.mxu0 0.0
        %328 = vmatpush1.msra.mxu0 0.0
        %329 = vmatprep.subr.mxu0 0.0
        %330 = vmatpush1.msra.mxu0 0.0
        %331 = vmatprep.subr.mxu0 0.0
        %332 = vmatpush1.msra.mxu0 0.0
        %333 = vmatprep.subr.mxu0 0.0
        %334 = vmatpush1.msra.mxu0 0.0
        %335 = vmatprep.subr.mxu0 0.0
        %336 = vmatpush1.msra.mxu0 0.0
        %337 = vmatprep.subr.mxu0 0.0
        %338 = vmatpush1.msra.mxu0 0.0
        %339 = vmatprep.subr.mxu0 0.0
        %340 = vmatpush1.msra.mxu0 0.0
        %341 = vmatprep.subr.mxu0 0.0
        %342 = vmatpush1.msra.mxu0 0.0
        %343 = vmatprep.subr.mxu0 0.0
        %344 = vmatpush1.msra.mxu0 0.0
        %345 = vmatprep.subr.mxu0 0.0
        %346 = vmatpush1.msra.mxu0 0.0
        %347 = vmatprep.subr.mxu0 0.0
        %348 = vmatpush1.msra.mxu0 0.0
        %349 = vmatprep.mubr.f32.mxu0 0.0
        %350 = vmatmul.mubr.f32.gmra.mrb[0].mxu0 %v279
        %v351 = vpop.f32.mrb[0].mxu0
        %v352 = vadd.f32 %v272, %v351
        %v353 = vpop.f32.mrb[0].mxu0
        %v354 = vadd.f32 %v274, %v353
        %355 = vdwg.mxu0
        %v356 = vld [vmem:[%s164 + $0x10] sm:$0xff]
        %s357 = scalar_lea.vmem %s1, 32
        %v358 = vld [vmem:[%s357] sm:$0xff]
        %v360 = vcombine.high %v356, %v356
        %v362 = vsel %vm196, %v358, 0
        %v364 = vsel %vm200, %v356, 0
        %v366 = vsel %vm200, %v360, 0
        %368 = vmatprep.subr.mxu0 %v366
        %369 = vmatpush1.msra.mxu0 %v364
        %370 = vmatprep.subr.mxu0 0.0
        %371 = vmatpush1.msra.mxu0 0.0
        %372 = vmatprep.subr.mxu0 0.0
        %373 = vmatpush1.msra.mxu0 0.0
        %374 = vmatprep.subr.mxu0 0.0
        %375 = vmatpush1.msra.mxu0 0.0
        %376 = vmatprep.subr.mxu0 0.0
        %377 = vmatpush1.msra.mxu0 0.0
        %378 = vmatprep.subr.mxu0 0.0
        %379 = vmatpush1.msra.mxu0 0.0
        %380 = vmatprep.subr.mxu0 0.0
        %381 = vmatpush1.msra.mxu0 0.0
        %382 = vmatprep.subr.mxu0 0.0
        %383 = vmatpush1.msra.mxu0 0.0
        %384 = vmatprep.subr.mxu0 0.0
        %385 = vmatpush1.msra.mxu0 0.0
        %386 = vmatprep.subr.mxu0 0.0
        %387 = vmatpush1.msra.mxu0 0.0
        %388 = vmatprep.subr.mxu0 0.0
        %389 = vmatpush1.msra.mxu0 0.0
        %390 = vmatprep.subr.mxu0 0.0
        %391 = vmatpush1.msra.mxu0 0.0
        %392 = vmatprep.subr.mxu0 0.0
        %393 = vmatpush1.msra.mxu0 0.0
        %394 = vmatprep.subr.mxu0 0.0
        %395 = vmatpush1.msra.mxu0 0.0
        %396 = vmatprep.subr.mxu0 0.0
        %397 = vmatpush1.msra.mxu0 0.0
        %398 = vmatprep.subr.mxu0 0.0
        %399 = vmatpush1.msra.mxu0 0.0
        %400 = vmatprep.subr.mxu0 0.0
        %401 = vmatpush1.msra.mxu0 0.0
        %402 = vmatprep.subr.mxu0 0.0
        %403 = vmatpush1.msra.mxu0 0.0
        %404 = vmatprep.subr.mxu0 0.0
        %405 = vmatpush1.msra.mxu0 0.0
        %406 = vmatprep.subr.mxu0 0.0
        %407 = vmatpush1.msra.mxu0 0.0
        %408 = vmatprep.subr.mxu0 0.0
        %409 = vmatpush1.msra.mxu0 0.0
        %410 = vmatprep.subr.mxu0 0.0
        %411 = vmatpush1.msra.mxu0 0.0
        %412 = vmatprep.subr.mxu0 0.0
        %413 = vmatpush1.msra.mxu0 0.0
        %414 = vmatprep.subr.mxu0 0.0
        %415 = vmatpush1.msra.mxu0 0.0
        %416 = vmatprep.subr.mxu0 0.0
        %417 = vmatpush1.msra.mxu0 0.0
        %418 = vmatprep.subr.mxu0 0.0
        %419 = vmatpush1.msra.mxu0 0.0
        %420 = vmatprep.subr.mxu0 0.0
        %421 = vmatpush1.msra.mxu0 0.0
        %422 = vmatprep.subr.mxu0 0.0
        %423 = vmatpush1.msra.mxu0 0.0
        %424 = vmatprep.subr.mxu0 0.0
        %425 = vmatpush1.msra.mxu0 0.0
        %426 = vmatprep.subr.mxu0 0.0
        %427 = vmatpush1.msra.mxu0 0.0
        %428 = vmatprep.subr.mxu0 0.0
        %429 = vmatpush1.msra.mxu0 0.0
        %430 = vmatprep.subr.mxu0 0.0
        %431 = vmatpush1.msra.mxu0 0.0
        %432 = vmatprep.mubr.f32.mxu0 0.0
        %433 = vmatmul.mubr.f32.gmra.mrb[0].mxu0 %v362
        %v434 = vpop.f32.mrb[0].mxu0
        %v435 = vadd.f32 0.0, %v434
        %v436 = vpop.f32.mrb[0].mxu0
        %v437 = vadd.f32 0.0, %v436
        %438 = vdwg.mxu0
        %v439 = vadd.f32 %v352, %v435
        %v440 = vadd.f32 %v354, %v437
        %442 = vset.pattern.permute.xlu0 0
        %443 = vperm.xlu0 %442, %v187
        %v444 = vpop.permute.xlu0 %443
        %v446 = vadd.f32 %v439, %v444
        %v447 = vadd.f32 %v440, %v444
        %v448 = vmax.f32 %v446, 0.0
        %v449 = vmax.f32 %v447, 0.0
        %450 = vst [vmem:[%s186] sm:$0xff] %v448
        %451 = vst [vmem:[%s186 + $0x8] sm:$0xff] %v449
        %v452 = vld [vmem:[%s164 + $0x10] sm:$0xff]
        %v453 = vld [vmem:[%s1] sm:$0xff]
        %v454 = vld [vmem:[%s164 + $0x18] sm:$0xff]
        %s455 = scalar_lea.vmem %s1, 8
        %v456 = vld [vmem:[%s455] sm:$0xff]
        %v458 = vcombine.high %v454, %v454
        %v460 = vsel %vm196, %v456, 0
        %v462 = vsel %vm200, %v454, 0
        %v464 = vsel %vm200, %v458, 0
        %466 = vmatprep.subr.mxu0 %v464
        %467 = vmatpush1.msra.mxu0 %v462
        %468 = vmatprep.subr.mxu0 0.0
        %469 = vmatpush1.msra.mxu0 0.0
        %470 = vmatprep.subr.mxu0 0.0
        %471 = vmatpush1.msra.mxu0 0.0
        %472 = vmatprep.subr.mxu0 0.0
        %473 = vmatpush1.msra.mxu0 0.0
        %474 = vmatprep.subr.mxu0 0.0
        %475 = vmatpush1.msra.mxu0 0.0
        %476 = vmatprep.subr.mxu0 0.0
        %477 = vmatpush1.msra.mxu0 0.0
        %478 = vmatprep.subr.mxu0 0.0
        %479 = vmatpush1.msra.mxu0 0.0
        %480 = vmatprep.subr.mxu0 0.0
        %481 = vmatpush1.msra.mxu0 0.0
        %482 = vmatprep.subr.mxu0 0.0
        %483 = vmatpush1.msra.mxu0 0.0
        %484 = vmatprep.subr.mxu0 0.0
        %485 = vmatpush1.msra.mxu0 0.0
        %486 = vmatprep.subr.mxu0 0.0
        %487 = vmatpush1.msra.mxu0 0.0
        %488 = vmatprep.subr.mxu0 0.0
        %489 = vmatpush1.msra.mxu0 0.0
        %490 = vmatprep.subr.mxu0 0.0
        %491 = vmatpush1.msra.mxu0 0.0
        %492 = vmatprep.subr.mxu0 0.0
        %493 = vmatpush1.msra.mxu0 0.0
        %494 = vmatprep.subr.mxu0 0.0
        %495 = vmatpush1.msra.mxu0 0.0
        %496 = vmatprep.subr.mxu0 0.0
        %497 = vmatpush1.msra.mxu0 0.0
        %498 = vmatprep.subr.mxu0 0.0
        %499 = vmatpush1.msra.mxu0 0.0
        %500 = vmatprep.subr.mxu0 0.0
        %501 = vmatpush1.msra.mxu0 0.0
        %502 = vmatprep.subr.mxu0 0.0
        %503 = vmatpush1.msra.mxu0 0.0
        %504 = vmatprep.subr.mxu0 0.0
        %505 = vmatpush1.msra.mxu0 0.0
        %506 = vmatprep.subr.mxu0 0.0
        %507 = vmatpush1.msra.mxu0 0.0
        %508 = vmatprep.subr.mxu0 0.0
        %509 = vmatpush1.msra.mxu0 0.0
        %510 = vmatprep.subr.mxu0 0.0
        %511 = vmatpush1.msra.mxu0 0.0
        %512 = vmatprep.subr.mxu0 0.0
        %513 = vmatpush1.msra.mxu0 0.0
        %514 = vmatprep.subr.mxu0 0.0
        %515 = vmatpush1.msra.mxu0 0.0
        %516 = vmatprep.subr.mxu0 0.0
        %517 = vmatpush1.msra.mxu0 0.0
        %518 = vmatprep.subr.mxu0 0.0
        %519 = vmatpush1.msra.mxu0 0.0
        %520 = vmatprep.subr.mxu0 0.0
        %521 = vmatpush1.msra.mxu0 0.0
        %522 = vmatprep.subr.mxu0 0.0
        %523 = vmatpush1.msra.mxu0 0.0
        %524 = vmatprep.subr.mxu0 0.0
        %525 = vmatpush1.msra.mxu0 0.0
        %526 = vmatprep.subr.mxu0 0.0
        %527 = vmatpush1.msra.mxu0 0.0
        %528 = vmatprep.subr.mxu0 0.0
        %529 = vmatpush1.msra.mxu0 0.0
        %530 = vmatprep.mubr.f32.mxu0 0.0
        %531 = vmatmul.mubr.f32.gmra.mrb[0].mxu0 %v460
        %v532 = vpop.f32.mrb[0].mxu0
        %v533 = vadd.f32 0.0, %v532
        %v534 = vpop.f32.mrb[0].mxu0
        %v535 = vadd.f32 0.0, %v534
        %536 = vdwg.mxu0
        %v538 = vcombine.high %v452, %v452
        %v540 = vsel %vm196, %v453, 0
        %v542 = vsel %vm200, %v452, 0
        %v544 = vsel %vm200, %v538, 0
        %546 = vmatprep.subr.mxu0 %v544
        %547 = vmatpush1.msra.mxu0 %v542
        %548 = vmatprep.subr.mxu0 0.0
        %549 = vmatpush1.msra.mxu0 0.0
        %550 = vmatprep.subr.mxu0 0.0
        %551 = vmatpush1.msra.mxu0 0.0
        %552 = vmatprep.subr.mxu0 0.0
        %553 = vmatpush1.msra.mxu0 0.0
        %554 = vmatprep.subr.mxu0 0.0
        %555 = vmatpush1.msra.mxu0 0.0
        %556 = vmatprep.subr.mxu0 0.0
        %557 = vmatpush1.msra.mxu0 0.0
        %558 = vmatprep.subr.mxu0 0.0
        %559 = vmatpush1.msra.mxu0 0.0
        %560 = vmatprep.subr.mxu0 0.0
        %561 = vmatpush1.msra.mxu0 0.0
        %562 = vmatprep.subr.mxu0 0.0
        %563 = vmatpush1.msra.mxu0 0.0
        %564 = vmatprep.subr.mxu0 0.0
        %565 = vmatpush1.msra.mxu0 0.0
        %566 = vmatprep.subr.mxu0 0.0
        %567 = vmatpush1.msra.mxu0 0.0
        %568 = vmatprep.subr.mxu0 0.0
        %569 = vmatpush1.msra.mxu0 0.0
        %570 = vmatprep.subr.mxu0 0.0
        %571 = vmatpush1.msra.mxu0 0.0
        %572 = vmatprep.subr.mxu0 0.0
        %573 = vmatpush1.msra.mxu0 0.0
        %574 = vmatprep.subr.mxu0 0.0
        %575 = vmatpush1.msra.mxu0 0.0
        %576 = vmatprep.subr.mxu0 0.0
        %577 = vmatpush1.msra.mxu0 0.0
        %578 = vmatprep.subr.mxu0 0.0
        %579 = vmatpush1.msra.mxu0 0.0
        %580 = vmatprep.subr.mxu0 0.0
        %581 = vmatpush1.msra.mxu0 0.0
        %582 = vmatprep.subr.mxu0 0.0
        %583 = vmatpush1.msra.mxu0 0.0
        %584 = vmatprep.subr.mxu0 0.0
        %585 = vmatpush1.msra.mxu0 0.0
        %586 = vmatprep.subr.mxu0 0.0
        %587 = vmatpush1.msra.mxu0 0.0
        %588 = vmatprep.subr.mxu0 0.0
        %589 = vmatpush1.msra.mxu0 0.0
        %590 = vmatprep.subr.mxu0 0.0
        %591 = vmatpush1.msra.mxu0 0.0
        %592 = vmatprep.subr.mxu0 0.0
        %593 = vmatpush1.msra.mxu0 0.0
        %594 = vmatprep.subr.mxu0 0.0
        %595 = vmatpush1.msra.mxu0 0.0
        %596 = vmatprep.subr.mxu0 0.0
        %597 = vmatpush1.msra.mxu0 0.0
        %598 = vmatprep.subr.mxu0 0.0
        %599 = vmatpush1.msra.mxu0 0.0
        %600 = vmatprep.subr.mxu0 0.0
        %601 = vmatpush1.msra.mxu0 0.0
        %602 = vmatprep.subr.mxu0 0.0
        %603 = vmatpush1.msra.mxu0 0.0
        %604 = vmatprep.subr.mxu0 0.0
        %605 = vmatpush1.msra.mxu0 0.0
        %606 = vmatprep.subr.mxu0 0.0
        %607 = vmatpush1.msra.mxu0 0.0
        %608 = vmatprep.subr.mxu0 0.0
        %609 = vmatpush1.msra.mxu0 0.0
        %610 = vmatprep.mubr.f32.mxu0 0.0
        %611 = vmatmul.mubr.f32.gmra.mrb[0].mxu0 %v540
        %v612 = vpop.f32.mrb[0].mxu0
        %v613 = vadd.f32 %v533, %v612
        %v614 = vpop.f32.mrb[0].mxu0
        %v615 = vadd.f32 %v535, %v614
        %616 = vdwg.mxu0
        %v617 = vld [vmem:[%s164 + $0x20] sm:$0xff]
        %v618 = vld [vmem:[%s189] sm:$0xff]
        %v620 = vcombine.high %v617, %v617
        %v622 = vsel %vm196, %v618, 0
        %v624 = vsel %vm200, %v617, 0
        %v626 = vsel %vm200, %v620, 0
        %628 = vmatprep.subr.mxu0 %v626
        %629 = vmatpush1.msra.mxu0 %v624
        %630 = vmatprep.subr.mxu0 0.0
        %631 = vmatpush1.msra.mxu0 0.0
        %632 = vmatprep.subr.mxu0 0.0
        %633 = vmatpush1.msra.mxu0 0.0
        %634 = vmatprep.subr.mxu0 0.0
        %635 = vmatpush1.msra.mxu0 0.0
        %636 = vmatprep.subr.mxu0 0.0
        %637 = vmatpush1.msra.mxu0 0.0
        %638 = vmatprep.subr.mxu0 0.0
        %639 = vmatpush1.msra.mxu0 0.0
        %640 = vmatprep.subr.mxu0 0.0
        %641 = vmatpush1.msra.mxu0 0.0
        %642 = vmatprep.subr.mxu0 0.0
        %643 = vmatpush1.msra.mxu0 0.0
        %644 = vmatprep.subr.mxu0 0.0
        %645 = vmatpush1.msra.mxu0 0.0
        %646 = vmatprep.subr.mxu0 0.0
        %647 = vmatpush1.msra.mxu0 0.0
        %648 = vmatprep.subr.mxu0 0.0
        %649 = vmatpush1.msra.mxu0 0.0
        %650 = vmatprep.subr.mxu0 0.0
        %651 = vmatpush1.msra.mxu0 0.0
        %652 = vmatprep.subr.mxu0 0.0
        %653 = vmatpush1.msra.mxu0 0.0
        %654 = vmatprep.subr.mxu0 0.0
        %655 = vmatpush1.msra.mxu0 0.0
        %656 = vmatprep.subr.mxu0 0.0
        %657 = vmatpush1.msra.mxu0 0.0
        %658 = vmatprep.subr.mxu0 0.0
        %659 = vmatpush1.msra.mxu0 0.0
        %660 = vmatprep.subr.mxu0 0.0
        %661 = vmatpush1.msra.mxu0 0.0
        %662 = vmatprep.subr.mxu0 0.0
        %663 = vmatpush1.msra.mxu0 0.0
        %664 = vmatprep.subr.mxu0 0.0
        %665 = vmatpush1.msra.mxu0 0.0
        %666 = vmatprep.subr.mxu0 0.0
        %667 = vmatpush1.msra.mxu0 0.0
        %668 = vmatprep.subr.mxu0 0.0
        %669 = vmatpush1.msra.mxu0 0.0
        %670 = vmatprep.subr.mxu0 0.0
        %671 = vmatpush1.msra.mxu0 0.0
        %672 = vmatprep.subr.mxu0 0.0
        %673 = vmatpush1.msra.mxu0 0.0
        %674 = vmatprep.subr.mxu0 0.0
        %675 = vmatpush1.msra.mxu0 0.0
        %676 = vmatprep.subr.mxu0 0.0
        %677 = vmatpush1.msra.mxu0 0.0
        %678 = vmatprep.subr.mxu0 0.0
        %679 = vmatpush1.msra.mxu0 0.0
        %680 = vmatprep.subr.mxu0 0.0
        %681 = vmatpush1.msra.mxu0 0.0
        %682 = vmatprep.subr.mxu0 0.0
        %683 = vmatpush1.msra.mxu0 0.0
        %684 = vmatprep.subr.mxu0 0.0
        %685 = vmatpush1.msra.mxu0 0.0
        %686 = vmatprep.subr.mxu0 0.0
        %687 = vmatpush1.msra.mxu0 0.0
        %688 = vmatprep.subr.mxu0 0.0
        %689 = vmatpush1.msra.mxu0 0.0
        %690 = vmatprep.subr.mxu0 0.0
        %691 = vmatpush1.msra.mxu0 0.0
        %692 = vmatprep.mubr.f32.mxu0 0.0
        %693 = vmatmul.mubr.f32.gmra.mrb[0].mxu0 %v622
        %v694 = vpop.f32.mrb[0].mxu0
        %v695 = vadd.f32 0.0, %v694
        %v696 = vpop.f32.mrb[0].mxu0
        %v697 = vadd.f32 0.0, %v696
        %698 = vdwg.mxu0
        %v699 = vadd.f32 %v613, %v695
        %v700 = vadd.f32 %v615, %v697
        %v701 = vld [vmem:[%s164 + $0x28] sm:$0xff]
        %v702 = vld [vmem:[%s192] sm:$0xff]
        %v704 = vcombine.high %v701, %v701
        %v706 = vsel %vm196, %v702, 0
        %v708 = vsel %vm200, %v701, 0
        %v710 = vsel %vm200, %v704, 0
        %712 = vmatprep.subr.mxu0 %v710
        %713 = vmatpush1.msra.mxu0 %v708
        %714 = vmatprep.subr.mxu0 0.0
        %715 = vmatpush1.msra.mxu0 0.0
        %716 = vmatprep.subr.mxu0 0.0
        %717 = vmatpush1.msra.mxu0 0.0
        %718 = vmatprep.subr.mxu0 0.0
        %719 = vmatpush1.msra.mxu0 0.0
        %720 = vmatprep.subr.mxu0 0.0
        %721 = vmatpush1.msra.mxu0 0.0
        %722 = vmatprep.subr.mxu0 0.0
        %723 = vmatpush1.msra.mxu0 0.0
        %724 = vmatprep.subr.mxu0 0.0
        %725 = vmatpush1.msra.mxu0 0.0
        %726 = vmatprep.subr.mxu0 0.0
        %727 = vmatpush1.msra.mxu0 0.0
        %728 = vmatprep.subr.mxu0 0.0
        %729 = vmatpush1.msra.mxu0 0.0
        %730 = vmatprep.subr.mxu0 0.0
        %731 = vmatpush1.msra.mxu0 0.0
        %732 = vmatprep.subr.mxu0 0.0
        %733 = vmatpush1.msra.mxu0 0.0
        %734 = vmatprep.subr.mxu0 0.0
        %735 = vmatpush1.msra.mxu0 0.0
        %736 = vmatprep.subr.mxu0 0.0
        %737 = vmatpush1.msra.mxu0 0.0
        %738 = vmatprep.subr.mxu0 0.0
        %739 = vmatpush1.msra.mxu0 0.0
        %740 = vmatprep.subr.mxu0 0.0
        %741 = vmatpush1.msra.mxu0 0.0
        %742 = vmatprep.subr.mxu0 0.0
        %743 = vmatpush1.msra.mxu0 0.0
        %744 = vmatprep.subr.mxu0 0.0
        %745 = vmatpush1.msra.mxu0 0.0
        %746 = vmatprep.subr.mxu0 0.0
        %747 = vmatpush1.msra.mxu0 0.0
        %748 = vmatprep.subr.mxu0 0.0
        %749 = vmatpush1.msra.mxu0 0.0
        %750 = vmatprep.subr.mxu0 0.0
        %751 = vmatpush1.msra.mxu0 0.0
        %752 = vmatprep.subr.mxu0 0.0
        %753 = vmatpush1.msra.mxu0 0.0
        %754 = vmatprep.subr.mxu0 0.0
        %755 = vmatpush1.msra.mxu0 0.0
        %756 = vmatprep.subr.mxu0 0.0
        %757 = vmatpush1.msra.mxu0 0.0
        %758 = vmatprep.subr.mxu0 0.0
        %759 = vmatpush1.msra.mxu0 0.0
        %760 = vmatprep.subr.mxu0 0.0
        %761 = vmatpush1.msra.mxu0 0.0
        %762 = vmatprep.subr.mxu0 0.0
        %763 = vmatpush1.msra.mxu0 0.0
        %764 = vmatprep.subr.mxu0 0.0
        %765 = vmatpush1.msra.mxu0 0.0
        %766 = vmatprep.subr.mxu0 0.0
        %767 = vmatpush1.msra.mxu0 0.0
        %768 = vmatprep.subr.mxu0 0.0
        %769 = vmatpush1.msra.mxu0 0.0
        %770 = vmatprep.subr.mxu0 0.0
        %771 = vmatpush1.msra.mxu0 0.0
        %772 = vmatprep.subr.mxu0 0.0
        %773 = vmatpush1.msra.mxu0 0.0
        %774 = vmatprep.subr.mxu0 0.0
        %775 = vmatpush1.msra.mxu0 0.0
        %776 = vmatprep.mubr.f32.mxu0 0.0
        %777 = vmatmul.mubr.f32.gmra.mrb[0].mxu0 %v706
        %v778 = vpop.f32.mrb[0].mxu0
        %v779 = vadd.f32 0.0, %v778
        %v780 = vpop.f32.mrb[0].mxu0
        %v781 = vadd.f32 0.0, %v780
        %782 = vdwg.mxu0
        %v783 = vadd.f32 %v699, %v779
        %v784 = vadd.f32 %v700, %v781
        %v785 = vld [vmem:[%s164 + $0x30] sm:$0xff]
        %v786 = vld [vmem:[%s357] sm:$0xff]
        %v788 = vcombine.high %v785, %v785
        %v790 = vsel %vm196, %v786, 0
        %v792 = vsel %vm200, %v785, 0
        %v794 = vsel %vm200, %v788, 0
        %796 = vmatprep.subr.mxu0 %v794
        %797 = vmatpush1.msra.mxu0 %v792
        %798 = vmatprep.subr.mxu0 0.0
        %799 = vmatpush1.msra.mxu0 0.0
        %800 = vmatprep.subr.mxu0 0.0
        %801 = vmatpush1.msra.mxu0 0.0
        %802 = vmatprep.subr.mxu0 0.0
        %803 = vmatpush1.msra.mxu0 0.0
        %804 = vmatprep.subr.mxu0 0.0
        %805 = vmatpush1.msra.mxu0 0.0
        %806 = vmatprep.subr.mxu0 0.0
        %807 = vmatpush1.msra.mxu0 0.0
        %808 = vmatprep.subr.mxu0 0.0
        %809 = vmatpush1.msra.mxu0 0.0
        %810 = vmatprep.subr.mxu0 0.0
        %811 = vmatpush1.msra.mxu0 0.0
        %812 = vmatprep.subr.mxu0 0.0
        %813 = vmatpush1.msra.mxu0 0.0
        %814 = vmatprep.subr.mxu0 0.0
        %815 = vmatpush1.msra.mxu0 0.0
        %816 = vmatprep.subr.mxu0 0.0
        %817 = vmatpush1.msra.mxu0 0.0
        %818 = vmatprep.subr.mxu0 0.0
        %819 = vmatpush1.msra.mxu0 0.0
        %820 = vmatprep.subr.mxu0 0.0
        %821 = vmatpush1.msra.mxu0 0.0
        %822 = vmatprep.subr.mxu0 0.0
        %823 = vmatpush1.msra.mxu0 0.0
        %824 = vmatprep.subr.mxu0 0.0
        %825 = vmatpush1.msra.mxu0 0.0
        %826 = vmatprep.subr.mxu0 0.0
        %827 = vmatpush1.msra.mxu0 0.0
        %828 = vmatprep.subr.mxu0 0.0
        %829 = vmatpush1.msra.mxu0 0.0
        %830 = vmatprep.subr.mxu0 0.0
        %831 = vmatpush1.msra.mxu0 0.0
        %832 = vmatprep.subr.mxu0 0.0
        %833 = vmatpush1.msra.mxu0 0.0
        %834 = vmatprep.subr.mxu0 0.0
        %835 = vmatpush1.msra.mxu0 0.0
        %836 = vmatprep.subr.mxu0 0.0
        %837 = vmatpush1.msra.mxu0 0.0
        %838 = vmatprep.subr.mxu0 0.0
        %839 = vmatpush1.msra.mxu0 0.0
        %840 = vmatprep.subr.mxu0 0.0
        %841 = vmatpush1.msra.mxu0 0.0
        %842 = vmatprep.subr.mxu0 0.0
        %843 = vmatpush1.msra.mxu0 0.0
        %844 = vmatprep.subr.mxu0 0.0
        %845 = vmatpush1.msra.mxu0 0.0
        %846 = vmatprep.subr.mxu0 0.0
        %847 = vmatpush1.msra.mxu0 0.0
        %848 = vmatprep.subr.mxu0 0.0
        %849 = vmatpush1.msra.mxu0 0.0
        %850 = vmatprep.subr.mxu0 0.0
        %851 = vmatpush1.msra.mxu0 0.0
        %852 = vmatprep.subr.mxu0 0.0
        %853 = vmatpush1.msra.mxu0 0.0
        %854 = vmatprep.subr.mxu0 0.0
        %855 = vmatpush1.msra.mxu0 0.0
        %856 = vmatprep.subr.mxu0 0.0
        %857 = vmatpush1.msra.mxu0 0.0
        %858 = vmatprep.subr.mxu0 0.0
        %859 = vmatpush1.msra.mxu0 0.0
        %860 = vmatprep.mubr.f32.mxu0 0.0
        %861 = vmatmul.mubr.f32.gmra.mrb[0].mxu0 %v790
        %v862 = vpop.f32.mrb[0].mxu0
        %v863 = vadd.f32 0.0, %v862
        %v864 = vpop.f32.mrb[0].mxu0
        %v865 = vadd.f32 0.0, %v864
        %866 = vdwg.mxu0
        %v867 = vadd.f32 %v783, %v863
        %v868 = vadd.f32 %v784, %v865
        %v869 = vadd.f32 %v867, %v444
        %v870 = vadd.f32 %v868, %v444
        %v871 = vmax.f32 %v869, 0.0
        %v872 = vmax.f32 %v870, 0.0
        %873 = vst [vmem:[%s186 + $0x10] sm:$0xff] %v871
        %874 = vst [vmem:[%s186 + $0x18] sm:$0xff] %v872
        %s875 = sand.u32 %s96, 1
        %s876 = scalar_lea.sflag [#allocation4], %s875
        %s877 = sand.u32 %s96, 1
        %s878 = smul.addr %s877, 32
        %s879 = scalar_lea.vmem [#allocation5], %s878
        // Predicated region
        $region37: #{tpu_custom_call.1} parent=31 // pred_check
          %p880 = pneg %p106
        $region38: #{tpu_custom_call.1} parent=31 // pred_check_branch
          %882 = sbr.rel (%p880) target = $region40
        $region39: #{tpu_custom_call.1} parent=31 // pred_region
          %s884 = ssub.s32 512, 512
          %885 = vsyncadd %s876, %s884
          %s886 = smul.addr %s20, 4
          %s887 = smul.addr %s886, 128
          %s888 = scalar_lea.hbm %s3, %s887
          %s890 = sshll.u32 %s879, 4
          %s891 = int_to_ptr.vmem [resolvable:$true] %s890
          %893 = dma.vmem_to_hbm [thread:$0]  %s891, 512, %s888, %s876
        $region40: #{tpu_custom_call.1} parent=31 // pred_fallthru
          _
      $region32: #{tpu_custom_call.1} parent=5 // pred_fallthru
        _
      %p894 = scmp.le.s32.totalorder 2, %s15
      // Predicated region
      $region41: #{tpu_custom_call.1} parent=5 // pred_check
        %p895 = pneg %p894
      $region42: #{tpu_custom_call.1} parent=5 // pred_check_branch
        %897 = sbr.rel (%p895) target = $region44
      $region43: #{tpu_custom_call.1} parent=5 // pred_region
        %s898 = ssub.s32 %s15, 2
        // Predicated region
        $region45: #{tpu_custom_call.1} parent=43 // pred_check
          %p899 = pneg %p112
        $region46: #{tpu_custom_call.1} parent=43 // pred_check_branch
          %901 = sbr.rel (%p899) target = $region48
        $region47: #{tpu_custom_call.1} parent=43 // pred_region
          %s902 = sand.u32 %s97, 1
          %s903 = scalar_lea.sflag [#allocation4], %s902
          %s904 = sand.u32 %s97, 1
          %s905 = smul.addr %s904, 32
          %s906 = scalar_lea.vmem [#allocation5], %s905
          %907 = dma.done %s903, 512
        $region48: #{tpu_custom_call.1} parent=43 // pred_fallthru
          _
      $region44: #{tpu_custom_call.1} parent=5 // pred_fallthru
        _
    $region6: #{tpu_custom_call.1} parent=1 // loop_footer
      %s19 = sadd.s32 1, %s15
    $region7: #{tpu_custom_call.1} parent=1 // loop_footer_branch
      %14 = sbr.rel target = $region3
    $region8: #{tpu_custom_call.1} parent=1 // loop_exit
      _
    %908 = vsyncpa [#allocation3], 1
    %s909 = scalar_lea.sflag [#allocation3], 1
    %910 = vsyncpa %s909, 1
    %911 = vsyncpa [#allocation4], 1
    %s912 = scalar_lea.sflag [#allocation4], 1
    %913 = vsyncpa %s912, 1

</llo_original>
